<compile_context>
chip_gen: v6e
topology: v6e:2x2x1
jax: 0.10.0
libtpu: 0.0.40
codegen_flags: <defaults>
</compile_context>

<pallas_src>
import jax
import jax.numpy as jnp
from jax.experimental import pallas as pl
from jax.experimental.pallas import tpu as pltpu


def _embedding_kernel(x_ref, wt_ref, posb_ref, o_ref):
    # x_ref:    (Rt, D) f32   -- flattened patch rows for this step (streamed)
    # wt_ref:   (D, D)  bf16  -- Linear weight, pre-transposed (in, out); resident
    # posb_ref: (Rt, D) f32   -- positions + bias, pre-folded & tiled to the row slab; resident
    # o_ref:    (Rt, D) out dtype
    x_bf16 = x_ref[...].astype(jnp.bfloat16)            # in-kernel cast (VPU, hidden under DMA)
    y = jnp.dot(x_bf16, wt_ref[...], preferred_element_type=jnp.float32)
    o_ref[...] = (y + posb_ref[...]).astype(o_ref.dtype)


def _tpu_limits():
    """(vmem_capacity_bytes, tensorcores_sharing_the_grid) with safe fallbacks."""
    vmem_cap = 64 << 20                     # conservative default (v7x per-core VMEM)
    try:
        vmem_cap = int(pltpu.get_tpu_info().vmem_capacity_bytes)
    except Exception:
        pass
    kind = ""
    try:
        kind = jax.devices()[0].device_kind.lower()
    except Exception:
        pass
    # chips whose grid "parallel" axes shard across 2 TensorCores
    num_tc = 2 if any(t in kind for t in ("v4", "v5p", "v7")) else 1
    return vmem_cap, num_tc


def _choose_batch_tile(batch, n_patches, emb, out_bytes, vmem_cap, num_tc,
                       max_rows=8192):
    """Largest Bt (rows per step = Bt*n_patches) whose streaming + resident VMEM
    fits ~70% of capacity.  On 2-TC chips prefer an even (>=2) grid length; on
    single-TC chips simply maximize the slab (grid=(1,) is fine)."""
    budget = int(0.7 * vmem_cap)
    resident_w = 2 * emb * emb * 2                        # bf16 W^T, worst-case 2 buffers
    per_row = (2 * (4 + out_bytes) * emb                  # x (f32) + out, double-buffered
               + 2 * 4 * emb)                             # tiled positions+bias (f32)
    rows_fit = max((budget - resident_w) // per_row, n_patches)
    rows_fit = min(rows_fit, max_rows)

    divisors = [d for d in range(1, batch + 1) if batch % d == 0]

    def ok(bt):
        rows = bt * n_patches
        # row tile must be sublane-aligned unless it spans the full array
        return rows <= rows_fit and (rows % 8 == 0 or bt == batch)

    fits = [d for d in divisors if ok(d)] or [batch]      # full-array block always legal

    if num_tc >= 2:
        even_steps = [d for d in fits if (batch // d) >= 2 and (batch // d) % 2 == 0]
        multi_steps = [d for d in fits if (batch // d) >= 2]
        pool = even_steps or multi_steps or fits
    else:
        pool = fits
    return max(pool)


def embedding_forward(x, weight, bias, positions, *, out_dtype=None):
    """x:        (B, n_patches, patch_size, patch_size*in_channels)  float32
       weight:   (emb, emb)   PyTorch convention (out_features, in_features)
       bias:     (emb,)
       positions:(n_patches, emb)
    """
    B, P, ph, pw = x.shape
    D = ph * pw
    assert weight.shape == (D, D)
    assert bias.shape == (D,)
    assert positions.shape == (P, D)

    out_dtype = x.dtype if out_dtype is None else out_dtype
    obytes = jnp.dtype(out_dtype).itemsize

    # Host-side prep. The activation reshape is contiguous (free); the bf16 cast
    # of x happens inside the kernel, so x is read from HBM exactly once.
    x2d = x.reshape(B * P, D)                                # Flatten(start_dim=-2), batch folded
    wt = weight.T.astype(jnp.bfloat16)                       # (in, out) so kernel does x @ wt
    posb = (positions + bias[None, :]).astype(jnp.float32)   # fold bias into positions (tiny)

    vmem_cap, num_tc = _tpu_limits()
    bt = _choose_batch_tile(B, P, D, obytes, vmem_cap, num_tc)
    rt = bt * P
    grid = (B // bt,)
    posb_t = jnp.tile(posb, (bt, 1))                         # (Rt, D), resident in VMEM

    # Generation-aware VMEM limit: actual need + headroom, capped at ~70% capacity.
    vmem_est = (2 * rt * D * 4            # x slabs, double-buffered (f32)
                + 2 * rt * D * obytes     # out slabs, double-buffered
                + 2 * D * D * 2           # W^T (bf16)
                + 2 * rt * D * 4)         # positions + bias (f32)
    vmem_limit = int(min(max(2 * vmem_est, 8 << 20), int(0.7 * vmem_cap)))

    # Advisory cost estimate (mem-bound kernel; helps XLA schedule neighbors).
    cost = pl.CostEstimate(
        flops=2 * B * P * D * D,
        transcendentals=0,
        bytes_accessed=B * P * D * (4 + obytes) + D * D * 2 + rt * D * 4,
    )

    out2d = pl.pallas_call(
        _embedding_kernel,
        out_shape=jax.ShapeDtypeStruct((B * P, D), out_dtype),
        grid_spec=pltpu.PrefetchScalarGridSpec(
            num_scalar_prefetch=0,
            grid=grid,
            in_specs=[
                pl.BlockSpec((rt, D), lambda i: (i, 0)),     # x rows (stream)
                pl.BlockSpec((D, D), lambda i: (0, 0)),      # W^T (resident)
                pl.BlockSpec((rt, D), lambda i: (0, 0)),     # positions + bias (resident)
            ],
            out_specs=pl.BlockSpec((rt, D), lambda i: (i, 0)),
        ),
        compiler_params=pltpu.CompilerParams(
            dimension_semantics=("parallel",),
            vmem_limit_bytes=vmem_limit,
        ),
        cost_estimate=cost,
    )(x2d, wt, posb_t)
    return out2d.reshape(B, P, D)


if __name__ == "__main__":
    # Small, module-consistent shapes: in_channels=8, patch_size=4 -> emb=128
    # (lane-aligned), n_patches=8, batch=4.
    B, n_patches, patch_size, in_channels = 4, 8, 4, 8
    emb = patch_size ** 2 * in_channels  # 128

    key = jax.random.PRNGKey(0)
    kx, kw, kb, kc, kp = jax.random.split(key, 5)

    x = jax.random.normal(kx, (B, n_patches, patch_size, patch_size * in_channels),
                          dtype=jnp.float32)
    # Deterministic synthetic parameters (PyTorch would use kaiming/uniform + randn).
    weight = jax.random.normal(kw, (emb, emb), dtype=jnp.float32) * 0.05   # (out, in)
    bias = jax.random.normal(kb, (emb,), dtype=jnp.float32) * 0.05
    cls_token = jax.random.normal(kc, (1, 1, emb), dtype=jnp.float32)      # unused in forward()
    positions = jax.random.normal(kp, (n_patches, emb), dtype=jnp.float32)

    out = embedding_forward(x, weight, bias, positions)
    out = jax.block_until_ready(out)
    assert out.shape == (B, n_patches, emb)

    x_flat = x.reshape(B, n_patches, emb)

    # Reference matching the kernel's datapath (bf16 operands, f32 accumulation).
    ref_bf16 = jnp.einsum(
        "bpd,do->bpo",
        x_flat.astype(jnp.bfloat16), weight.T.astype(jnp.bfloat16),
        preferred_element_type=jnp.float32) + bias + positions
    assert jnp.allclose(out.astype(jnp.float32), ref_bf16, atol=2e-3, rtol=2e-3)

    # Loose sanity check against the pure-f32 PyTorch semantics.
    ref_f32 = jnp.einsum("bpd,od->bpo", x_flat, weight) + bias + positions
    assert jnp.allclose(out.astype(jnp.float32), ref_f32, atol=5e-2, rtol=5e-2)

    print("KERNEL_OK")
</pallas_src>

<mosaic_0001>
module attributes {stable_mosaic.version = 11 : i64} {
  func.func @_embedding_kernel(%arg0: i32, %arg1: memref<32x128xf32, #tpu.memory_space<vmem>>, %arg2: memref<128x128xbf16, #tpu.memory_space<vmem>>, %arg3: memref<32x128xf32, #tpu.memory_space<vmem>>, %arg4: memref<32x128xf32, #tpu.memory_space<vmem>>) attributes {dimension_semantics = [#tpu.dimension_semantics<parallel>], iteration_bounds = array<i64: 1>, scalar_prefetch = 0 : i64, scratch_operands = 0 : i64, tpu.core_type = #tpu.core_type<tc>, window_params = [{transform_indices = @transform_0, window_bounds = array<i64: 32, 128>}, {pipeline_mode = #tpu.pipeline_mode<synchronous>, transform_indices = @transform_1, window_bounds = array<i64: 128, 128>}, {pipeline_mode = #tpu.pipeline_mode<synchronous>, transform_indices = @transform_2, window_bounds = array<i64: 32, 128>}, {transform_indices = @transform_3, window_bounds = array<i64: 32, 128>}]} {
    %c0 = arith.constant 0 : index
    %c0_0 = arith.constant 0 : index
    %0 = vector.load %arg1[%c0, %c0_0] : memref<32x128xf32, #tpu.memory_space<vmem>>, vector<32x128xf32>
    %1 = arith.truncf %0 : vector<32x128xf32> to vector<32x128xbf16>
    %c0_1 = arith.constant 0 : index
    %c0_2 = arith.constant 0 : index
    %2 = vector.load %arg2[%c0_1, %c0_2] : memref<128x128xbf16, #tpu.memory_space<vmem>>, vector<128x128xbf16>
    %cst = arith.constant dense<0.000000e+00> : vector<32x128xf32>
    %3 = tpu.matmul %1, %2, %cst {dimension_numbers = #tpu.dot_dimension_numbers<[1], [0], [0], [1], [0, 0, 1, 1], [], []>} : vector<32x128xbf16>, vector<128x128xbf16>, vector<32x128xf32> -> vector<32x128xf32>
    %c0_3 = arith.constant 0 : index
    %c0_4 = arith.constant 0 : index
    %4 = vector.load %arg3[%c0_3, %c0_4] : memref<32x128xf32, #tpu.memory_space<vmem>>, vector<32x128xf32>
    %5 = arith.addf %3, %4 : vector<32x128xf32>
    %c0_5 = arith.constant 0 : index
    %c0_6 = arith.constant 0 : index
    %6 = vector.load %arg4[%c0_5, %c0_6] : memref<32x128xf32, #tpu.memory_space<vmem>>, vector<32x128xf32>
    tpu.vector_store %arg4[%c0_5, %c0_6], %5 {strides = array<i32>} : memref<32x128xf32, #tpu.memory_space<vmem>>, vector<32x128xf32>,
    return
  }
  func.func @transform_0(%arg0: i32) -> (i32, i32) {
    %c0_i32 = arith.constant 0 : i32
    %c0_i32_0 = arith.constant 0 : i32
    return %arg0, %c0_i32 : i32, i32
  }
  func.func @transform_1(%arg0: i32) -> (i32, i32) {
    %c0_i32 = arith.constant 0 : i32
    %c0_i32_0 = arith.constant 0 : i32
    %c0_i32_1 = arith.constant 0 : i32
    return %c0_i32, %c0_i32_0 : i32, i32
  }
  func.func @transform_2(%arg0: i32) -> (i32, i32) {
    %c0_i32 = arith.constant 0 : i32
    %c0_i32_0 = arith.constant 0 : i32
    %c0_i32_1 = arith.constant 0 : i32
    return %c0_i32, %c0_i32_0 : i32, i32
  }
  func.func @transform_3(%arg0: i32) -> (i32, i32) {
    %c0_i32 = arith.constant 0 : i32
    %c0_i32_0 = arith.constant 0 : i32
    return %arg0, %c0_i32 : i32, i32
  }
}

</mosaic_0001>

<llo_original>
// kernel: tpu_custom_call.1
$region0: #{tpu_custom_call.1}
  #allocation0 [shape = 'u32[]', space=smem, size = 0x4, offset = 0x4, fixed_abs, tag = 'smem constant byte address 0x4 - core index']
  #allocation1 [shape = 'u32[144,128]{1,0:T(1,128)}', space=vmem, size = 0x12000, scoped, tag = 'internal scratch']
  %s0 = inlined_call_operand.hbm [shape: f32[32,128], index: 0, kind: input, shape index: {}]
  %s1 = inlined_call_operand.hbm [shape: bf16[128,128], index: 1, kind: input, shape index: {}]
  %s2 = inlined_call_operand.hbm [shape: f32[32,128], index: 2, kind: input, shape index: {}]
  %s3 = inlined_call_operand.hbm [shape: f32[32,128], index: 3, kind: output, shape index: {}]
  %s4 = sld [smem:[#allocation0]]
  $region34: #{tpu_custom_call.1} parent=0
    _
  %s6 = ssub.s32 1, %s4
  %s7 = scalar_select 0, %s6, %s4
  $region1: #{tpu_custom_call.1} parent=0
    #allocation2 [shape = 'u8[16384]{0}', space=vmem, size = 0x4000, scoped, tag = 'input window, operand 0, single buffered']
    #allocation3 [shape = 's32[1]{0}', space=sflag, size = 0x4, scoped, tag = 'scoped memory for tpu_custom_call.1']
    #allocation4 [shape = 's32[1]{0}', space=sflag, size = 0x4, scoped, tag = 'scoped memory for tpu_custom_call.1']
    #allocation5 [shape = 'u8[32768]{0}', space=vmem, size = 0x8000, scoped, tag = 'input window, operand 1, single buffered']
    #allocation6 [shape = 's32[1]{0}', space=sflag, size = 0x4, scoped, tag = 'scoped memory for tpu_custom_call.1']
    #allocation7 [shape = 'u8[16384]{0}', space=vmem, size = 0x4000, scoped, tag = 'input window, operand 2, single buffered']
    #allocation8 [shape = 'u8[16384]{0}', space=vmem, size = 0x4000, scoped, tag = 'output window, operand 0, single buffered']
    %8 = vsyncpa [#allocation3], 0
    %9 = vsyncpa [#allocation6], 0
    %10 = vsyncpa [#allocation4], 0
    // Predicated region
    $region2: #{tpu_custom_call.1} parent=1 // pred_check
      _
    $region3: #{tpu_custom_call.1} parent=1 // pred_check_branch
      %12 = sbr.rel (0) target = $region5
    $region4: #{tpu_custom_call.1} parent=1 // pred_region
      %s14 = ssub.s32 512, 512
      %15 = vsyncadd [#allocation3], %s14
      %s16 = sshll.u32 [#allocation2], 4
      %s17 = int_to_ptr.vmem [resolvable:$true] %s16
      %22 = dma.hbm_to_vmem [thread:$0]  %s0, 512, %s17, [#allocation3], 128, 128, 8
    $region5: #{tpu_custom_call.1} parent=1 // pred_fallthru
      _
    // Predicated region
    $region6: #{tpu_custom_call.1} parent=1 // pred_check
      _
    $region7: #{tpu_custom_call.1} parent=1 // pred_check_branch
      %24 = sbr.rel (0) target = $region9
    $region8: #{tpu_custom_call.1} parent=1 // pred_region
      %s26 = ssub.s32 1024, 1024
      %27 = vsyncadd [#allocation6], %s26
      %s28 = sshll.u32 [#allocation5], 4
      %s29 = int_to_ptr.vmem [resolvable:$true] %s28
      %34 = dma.hbm_to_vmem [thread:$0]  %s1, 1024, %s29, [#allocation6], 64, 64, 4
    $region9: #{tpu_custom_call.1} parent=1 // pred_fallthru
      _
    // Predicated region
    $region10: #{tpu_custom_call.1} parent=1 // pred_check
      _
    $region11: #{tpu_custom_call.1} parent=1 // pred_check_branch
      %36 = sbr.rel (0) target = $region13
    $region12: #{tpu_custom_call.1} parent=1 // pred_region
      %s38 = ssub.s32 512, 512
      %39 = vsyncadd [#allocation6], %s38
      %s40 = sshll.u32 [#allocation7], 4
      %s41 = int_to_ptr.vmem [resolvable:$true] %s40
      %46 = dma.hbm_to_vmem [thread:$0]  %s2, 512, %s41, [#allocation6], 128, 128, 8
    $region13: #{tpu_custom_call.1} parent=1 // pred_fallthru
      _
    // Predicated region
    $region14: #{tpu_custom_call.1} parent=1 // pred_check
      _
    $region15: #{tpu_custom_call.1} parent=1 // pred_check_branch
      %48 = sbr.rel (0) target = $region17
    $region16: #{tpu_custom_call.1} parent=1 // pred_region
      %49 = dma.done [#allocation3], 512
    $region17: #{tpu_custom_call.1} parent=1 // pred_fallthru
      _
    // Predicated region
    $region18: #{tpu_custom_call.1} parent=1 // pred_check
      _
    $region19: #{tpu_custom_call.1} parent=1 // pred_check_branch
      %51 = sbr.rel (0) target = $region21
    $region20: #{tpu_custom_call.1} parent=1 // pred_region
      %52 = dma.done [#allocation6], 1024
    $region21: #{tpu_custom_call.1} parent=1 // pred_fallthru
      _
    // Predicated region
    $region22: #{tpu_custom_call.1} parent=1 // pred_check
      _
    $region23: #{tpu_custom_call.1} parent=1 // pred_check_branch
      %54 = sbr.rel (0) target = $region25
    $region24: #{tpu_custom_call.1} parent=1 // pred_region
      %55 = dma.done [#allocation6], 512
    $region25: #{tpu_custom_call.1} parent=1 // pred_fallthru
      _
    %v57 = vld [vmem:[#allocation2] sm:$0xff]
    %v58 = vld [vmem:[#allocation2 + $0x8] sm:$0xff]
    %v59 = vld [vmem:[#allocation2 + $0x10] sm:$0xff]
    %v60 = vld [vmem:[#allocation2 + $0x18] sm:$0xff]
    %v61 = vpack.c.bf16 %v58, %v57
    %v62 = vpack.c.bf16 %v60, %v59
    %v63 = vld [vmem:[#allocation5] sm:$0xf]
    %v64 = vld [vmem:[#allocation5 + $0x4] sm:$0xf]
    %v65 = vld [vmem:[#allocation5 + $0x8] sm:$0xf]
    %v66 = vld [vmem:[#allocation5 + $0xc] sm:$0xf]
    %v67 = vld [vmem:[#allocation5 + $0x10] sm:$0xf]
    %v68 = vld [vmem:[#allocation5 + $0x14] sm:$0xf]
    %v69 = vld [vmem:[#allocation5 + $0x18] sm:$0xf]
    %v70 = vld [vmem:[#allocation5 + $0x1c] sm:$0xf]
    %v71 = vld [vmem:[#allocation5 + $0x20] sm:$0xf]
    %v72 = vld [vmem:[#allocation5 + $0x24] sm:$0xf]
    %v73 = vld [vmem:[#allocation5 + $0x28] sm:$0xf]
    %v74 = vld [vmem:[#allocation5 + $0x2c] sm:$0xf]
    %v75 = vld [vmem:[#allocation5 + $0x30] sm:$0xf]
    %v76 = vld [vmem:[#allocation5 + $0x34] sm:$0xf]
    %v77 = vld [vmem:[#allocation5 + $0x38] sm:$0xf]
    %v78 = vld [vmem:[#allocation5 + $0x3c] sm:$0xf]
    %v79 = vld [vmem:[#allocation7] sm:$0xff]
    %v80 = vld [vmem:[#allocation7 + $0x8] sm:$0xff]
    %v81 = vld [vmem:[#allocation7 + $0x10] sm:$0xff]
    %v82 = vld [vmem:[#allocation7 + $0x18] sm:$0xff]
    %v99 = vunpack.c.l.b16 %v63
    %v100 = vunpack.c.l.b16 %v64
    %v101 = vunpack.c.l.b16 %v65
    %v102 = vunpack.c.l.b16 %v66
    %v103 = vunpack.c.l.b16 %v67
    %v104 = vunpack.c.l.b16 %v68
    %v105 = vunpack.c.l.b16 %v69
    %v106 = vunpack.c.l.b16 %v70
    %v107 = vunpack.c.l.b16 %v71
    %v108 = vunpack.c.l.b16 %v72
    %v109 = vunpack.c.l.b16 %v73
    %v110 = vunpack.c.l.b16 %v74
    %v111 = vunpack.c.l.b16 %v75
    %v112 = vunpack.c.l.b16 %v76
    %v113 = vunpack.c.l.b16 %v77
    %v114 = vunpack.c.l.b16 %v78
    %v115 = vpack.c.b16 %v100, %v99
    %v116 = vpack.c.b16 %v102, %v101
    %v117 = vpack.c.b16 %v104, %v103
    %v118 = vpack.c.b16 %v106, %v105
    %v119 = vpack.c.b16 %v108, %v107
    %v120 = vpack.c.b16 %v110, %v109
    %v121 = vpack.c.b16 %v112, %v111
    %v122 = vpack.c.b16 %v114, %v113
    %131 = vmatprep.subr.bf16.mxu0 0
    %132 = vmatpush1.bf16.msra.mxu0 %v122
    %133 = vmatprep.subr.bf16.mxu0 0
    %134 = vmatpush1.bf16.msra.mxu0 %v121
    %135 = vmatprep.subr.bf16.mxu0 0
    %136 = vmatpush1.bf16.msra.mxu0 %v120
    %137 = vmatprep.subr.bf16.mxu0 0
    %138 = vmatpush1.bf16.msra.mxu0 %v119
    %139 = vmatprep.subr.bf16.mxu0 0
    %140 = vmatpush1.bf16.msra.mxu0 %v118
    %141 = vmatprep.subr.bf16.mxu0 0
    %142 = vmatpush1.bf16.msra.mxu0 %v117
    %143 = vmatprep.subr.bf16.mxu0 0
    %144 = vmatpush1.bf16.msra.mxu0 %v116
    %145 = vmatprep.subr.bf16.mxu0 0
    %146 = vmatpush1.bf16.msra.mxu0 %v115
    %147 = vmatprep.subr.bf16.mxu0 0
    %148 = vmatpush2.bf16.msra.mxu0 0
    %149 = vmatprep.subr.bf16.mxu0 0
    %150 = vmatpush2.bf16.msra.mxu0 0
    %151 = vmatprep.subr.bf16.mxu0 0
    %152 = vmatpush2.bf16.msra.mxu0 0
    %153 = vmatprep.subr.bf16.mxu0 0
    %154 = vmatpush2.bf16.msra.mxu0 0
    %155 = vmatprep.subr.bf16.mxu0 0
    %156 = vmatpush2.bf16.msra.mxu0 0
    %157 = vmatprep.subr.bf16.mxu0 0
    %158 = vmatpush2.bf16.msra.mxu0 0
    %159 = vmatprep.subr.bf16.mxu0 0
    %160 = vmatpush2.bf16.msra.mxu0 0
    %161 = vmatprep.subr.bf16.mxu0 0
    %162 = vmatpush2.bf16.msra.mxu0 0
    %163 = vmatprep.mubr.bf16.mxu0 0
    %164 = vmatmul.mubr.bf16.gmra.mxu0 %v61
    %v165 = vpop.f32.mrf.mxu0
    %v166 = vadd.f32 %v79, %v165
    %v167 = vpop.f32.mrf.mxu0
    %v168 = vpop.f32.mrf.mxu0
    %v169 = vadd.f32 %v80, %v168
    %v170 = vpop.f32.mrf.mxu0
    %171 = vmatprep.mubr.bf16.mxu0 0
    %172 = vmatmul.mubr.bf16.gmra.mxu0 %v62
    %v173 = vpop.f32.mrf.mxu0
    %v174 = vadd.f32 %v81, %v173
    %v175 = vpop.f32.mrf.mxu0
    %v176 = vpop.f32.mrf.mxu0
    %v177 = vadd.f32 %v82, %v176
    %v178 = vpop.f32.mrf.mxu0
    %179 = vdwg.mxu0
    %180 = vst [vmem:[#allocation8] sm:$0xff] %v166
    %181 = vst [vmem:[#allocation8 + $0x8] sm:$0xff] %v169
    %182 = vst [vmem:[#allocation8 + $0x10] sm:$0xff] %v174
    %183 = vst [vmem:[#allocation8 + $0x18] sm:$0xff] %v177
    // Predicated region
    $region26: #{tpu_custom_call.1} parent=1 // pred_check
      _
    $region27: #{tpu_custom_call.1} parent=1 // pred_check_branch
      %185 = sbr.rel (0) target = $region29
    $region28: #{tpu_custom_call.1} parent=1 // pred_region
      %s187 = ssub.s32 512, 512
      %188 = vsyncadd [#allocation4], %s187
      %s189 = sshll.u32 [#allocation8], 4
      %s190 = int_to_ptr.vmem [resolvable:$true] %s189
      %195 = dma.vmem_to_hbm [thread:$0]  %s190, 512, %s3, [#allocation4], 128, 128, 8
    $region29: #{tpu_custom_call.1} parent=1 // pred_fallthru
      _
    // Predicated region
    $region30: #{tpu_custom_call.1} parent=1 // pred_check
      _
    $region31: #{tpu_custom_call.1} parent=1 // pred_check_branch
      %197 = sbr.rel (0) target = $region33
    $region32: #{tpu_custom_call.1} parent=1 // pred_region
      %198 = dma.done [#allocation4], 512
    $region33: #{tpu_custom_call.1} parent=1 // pred_fallthru
      _
    %199 = vsyncpa [#allocation3], 1
    %200 = vsyncpa [#allocation6], 1
    %201 = vsyncpa [#allocation4], 1

</llo_original>
